<compile_context>
chip_gen: v7x
topology: tpu7x:2x2x1
jax: 0.10.0
libtpu: 0.0.40
codegen_flags: <defaults>
</compile_context>

<pallas_src>
import functools

import jax
import jax.numpy as jnp
from jax import lax
from jax.experimental import pallas as pl
from jax.experimental.pallas import tpu as pltpu  # noqa: F401  (TPU backend)


def _round_up(n, m):
    return ((n + m - 1) // m) * m


# ----------------------------- fused Pallas kernel ---------------------------

def _branch_kernel(patch_ref, wpack_ref, out_ref, *,
                   B, HW, C_OUT, HID, PROJ, R_W1, R_B1, R_W2, R_B2):
    # patch_ref: (CKP, B*HW)  -- im2col patches + ones row (folded conv bias)
    # wpack_ref: (RP, WPW)    -- packed [wc|bc], w1, b1, w2, b2 (sublane-aligned rows)
    # out_ref:   (B, PROJ)
    inv_hw = jnp.float32(1.0 / HW)

    # --- encoder: 3x3 conv as ONE im2col matmul (bias folded) + ReLU + GAP ---
    wc = wpack_ref[0:C_OUT, :]                                   # (C_OUT, CKP)
    y = jnp.maximum(
        jnp.dot(wc, patch_ref[...], preferred_element_type=jnp.float32),
        0.0)                                                     # (C_OUT, B*HW) lane-dense
    # per-image pooled sums over lane-aligned (multiple-of-128) slices
    fm_t = jnp.concatenate(
        [jnp.sum(y[:, b * HW:(b + 1) * HW], axis=-1, keepdims=True)
         for b in range(B)], axis=-1)                            # (C_OUT, B)
    fm = fm_t.T * inv_hw                                         # (B, C_OUT), stays in vregs

    # --- projector: Linear -> ReLU -> Linear (weights from the packed slab) ---
    w1 = wpack_ref[R_W1:R_W1 + C_OUT, 0:HID]                     # (C_OUT, HID)
    b1 = wpack_ref[R_B1:R_B1 + 1, 0:HID]                         # (1, HID)
    h = jnp.maximum(
        jnp.dot(fm, w1, preferred_element_type=jnp.float32) + b1, 0.0)
    w2 = wpack_ref[R_W2:R_W2 + HID, 0:PROJ]                      # (HID, PROJ)
    b2 = wpack_ref[R_B2:R_B2 + 1, 0:PROJ]                        # (1, PROJ)
    out_ref[...] = (jnp.dot(h, w2, preferred_element_type=jnp.float32)
                    + b2).astype(out_ref.dtype)


# ------------------------------ JAX glue / wrapper ----------------------------

@jax.jit
def branch_forward(x, params):
    """Branch.forward: y = projector(encoder(x)), one fused pallas_call."""
    B, C, H, W = x.shape
    HW = H * W
    CK = C * 9
    C_OUT = params["w_conv"].shape[0]
    HID = params["w1"].shape[1]
    PROJ = params["w2"].shape[1]

    CKP = _round_up(CK + 1, 8)             # +1 ones row (conv bias), sublane aligned
    # packed-weight slab row offsets (each block padded to a multiple of 8 rows)
    R_W1 = _round_up(C_OUT, 8)
    R_B1 = R_W1 + _round_up(C_OUT, 8)
    R_W2 = R_B1 + 8
    R_B2 = R_W2 + _round_up(HID, 8)
    RP = R_B2 + 8
    WPW = max(CKP, HID, PROJ)

    # --- lane-dense im2col: (CKP, B*HW); feature idx = c*9 + kh*3 + kw;
    #     row CK is all ones (folds the conv bias into the matmul) ---
    xp = jnp.pad(x, ((0, 0), (0, 0), (1, 1), (1, 1)))
    slabs = [xp[:, :, kh:kh + H, kw:kw + W]
             for kh in range(3) for kw in range(3)]              # 9 x (B, C, H, W)
    p = jnp.stack(slabs, axis=2).reshape(B, CK, HW)              # (B, CK, HW)
    p = jnp.transpose(p, (1, 0, 2)).reshape(CK, B * HW)          # (CK, B*HW)
    patches = jnp.concatenate(
        [p,
         jnp.ones((1, B * HW), jnp.float32),
         jnp.zeros((CKP - CK - 1, B * HW), jnp.float32)], axis=0)  # (CKP, B*HW)

    # --- pack every weight/bias into ONE slab -> a single tiny input DMA ---
    def _place(a, rows, cols):
        return jnp.pad(a, ((0, rows - a.shape[0]), (0, cols - a.shape[1])))

    wc_aug = jnp.concatenate(
        [params["w_conv"].reshape(C_OUT, CK),
         params["b_conv"].reshape(C_OUT, 1)], axis=1)            # (C_OUT, CK+1)
    wpack = jnp.concatenate([
        _place(wc_aug, R_W1, WPW),
        _place(params["w1"], R_B1 - R_W1, WPW),
        _place(params["b1"].reshape(1, HID), R_W2 - R_B1, WPW),
        _place(params["w2"], R_B2 - R_W2, WPW),
        _place(params["b2"].reshape(1, PROJ), RP - R_B2, WPW),
    ], axis=0)                                                   # (RP, WPW)

    kernel = functools.partial(
        _branch_kernel, B=B, HW=HW, C_OUT=C_OUT, HID=HID, PROJ=PROJ,
        R_W1=R_W1, R_B1=R_B1, R_W2=R_W2, R_B2=R_B2)

    return pl.pallas_call(
        kernel,
        out_shape=jax.ShapeDtypeStruct((B, PROJ), jnp.float32),
        in_specs=[
            pl.BlockSpec((CKP, B * HW), lambda: (0, 0)),
            pl.BlockSpec((RP, WPW), lambda: (0, 0)),
        ],
        out_specs=pl.BlockSpec((B, PROJ), lambda: (0, 0)),
    )(patches, wpack)


def _branch_reference(x, params):
    """Pure-JAX reference (same math) for a correctness sanity check."""
    conv = lax.conv_general_dilated(
        x, params["w_conv"], window_strides=(1, 1), padding="SAME",
        dimension_numbers=("NCHW", "OIHW", "NCHW"),
        precision=lax.Precision.HIGHEST)
    conv = jnp.maximum(conv + params["b_conv"][None, :, None, None], 0.0)
    fm = jnp.mean(conv, axis=(2, 3))                             # (B, Cout)
    h = jnp.maximum(
        jnp.dot(fm, params["w1"], precision=lax.Precision.HIGHEST)
        + params["b1"], 0.0)
    return jnp.dot(h, params["w2"], precision=lax.Precision.HIGHEST) + params["b2"]


# --------------------------------- main ---------------------------------------

if __name__ == "__main__":
    key = jax.random.PRNGKey(0)
    k_x, k_wc, k_bc, k_w1, k_b1, k_w2, k_b2 = jax.random.split(key, 7)

    B, C, H, W = 2, 4, 16, 16
    C_OUT, HID, PROJ = 8, 32, 16

    x = jax.random.normal(k_x, (B, C, H, W), dtype=jnp.float32)

    # Deterministic synthetic parameters (PyTorch shapes: conv (Cout, Cin, 3, 3),
    # linear weights stored here already transposed as (in, out)).
    params = {
        "w_conv": 0.1 * jax.random.normal(k_wc, (C_OUT, C, 3, 3), jnp.float32),
        "b_conv": 0.1 * jax.random.normal(k_bc, (C_OUT,), jnp.float32),
        "w1": 0.1 * jax.random.normal(k_w1, (C_OUT, HID), jnp.float32),
        "b1": 0.1 * jax.random.normal(k_b1, (HID,), jnp.float32),
        "w2": 0.1 * jax.random.normal(k_w2, (HID, PROJ), jnp.float32),
        "b2": 0.1 * jax.random.normal(k_b2, (PROJ,), jnp.float32),
    }

    y = branch_forward(x, params)
    jax.block_until_ready(y)

    assert y.shape == (B, PROJ) and y.dtype == jnp.float32

    y_ref = _branch_reference(x, params)
    assert jnp.allclose(y, y_ref, rtol=1e-3, atol=1e-4), "mismatch vs reference"

    print("KERNEL_OK")
</pallas_src>

<mosaic_0001>
module attributes {stable_mosaic.version = 11 : i64} {
  func.func @_branch_kernel(%arg0: memref<40x512xf32, #tpu.memory_space<vmem>>, %arg1: memref<64x40xf32, #tpu.memory_space<vmem>>, %arg2: memref<2x16xf32, #tpu.memory_space<vmem>>) attributes {dimension_semantics = [], scalar_prefetch = 0 : i64, scratch_operands = 0 : i64, tpu.core_type = #tpu.core_type<tc>} {
    %c0 = arith.constant 0 : index
    %c0_0 = arith.constant 0 : index
    %0 = vector.load %arg1[%c0, %c0_0] : memref<64x40xf32, #tpu.memory_space<vmem>>, vector<8x40xf32>
    %c0_1 = arith.constant 0 : index
    %c0_2 = arith.constant 0 : index
    %1 = vector.load %arg0[%c0_1, %c0_2] : memref<40x512xf32, #tpu.memory_space<vmem>>, vector<40x512xf32>
    %cst = arith.constant dense<0.000000e+00> : vector<8x512xf32>
    %2 = tpu.matmul %0, %1, %cst {dimension_numbers = #tpu.dot_dimension_numbers<[1], [0], [0], [1], [0, 0, 1, 1], [], []>} : vector<8x40xf32>, vector<40x512xf32>, vector<8x512xf32> -> vector<8x512xf32>
    %cst_3 = arith.constant 0.000000e+00 : f32
    %3 = vector.broadcast %cst_3 : f32 to vector<8x512xf32>
    %4 = arith.maximumf %2, %3 : vector<8x512xf32>
    %5 = vector.extract_strided_slice %4 {offsets = [0, 0], sizes = [8, 256], strides = [1, 1]} : vector<8x512xf32> to vector<8x256xf32>
    %cst_4 = arith.constant dense<0.000000e+00> : vector<8xf32>
    %6 = vector.multi_reduction <add>, %5, %cst_4 [1] : vector<8x256xf32> to vector<8xf32>
    %7 = vector.shape_cast %6 : vector<8xf32> to vector<8x1xf32>
    %8 = vector.extract_strided_slice %4 {offsets = [0, 256], sizes = [8, 256], strides = [1, 1]} : vector<8x512xf32> to vector<8x256xf32>
    %cst_5 = arith.constant dense<0.000000e+00> : vector<8xf32>
    %9 = vector.multi_reduction <add>, %8, %cst_5 [1] : vector<8x256xf32> to vector<8xf32>
    %10 = vector.shape_cast %9 : vector<8xf32> to vector<8x1xf32>
    %11 = tpu.concatenate %7, %10 in 1 : vector<8x1xf32>, vector<8x1xf32> -> vector<8x2xf32>
    %12 = tpu.transpose %11, [1, 0] : vector<8x2xf32> -> vector<2x8xf32>
    %cst_6 = arith.constant 3.906250e-03 : f32
    %13 = vector.broadcast %cst_6 : f32 to vector<2x8xf32>
    %14 = arith.mulf %12, %13 : vector<2x8xf32>
    %c8 = arith.constant 8 : index
    %c0_7 = arith.constant 0 : index
    %15 = vector.load %arg1[%c8, %c0_7] : memref<64x40xf32, #tpu.memory_space<vmem>>, vector<8x32xf32>
    %c16 = arith.constant 16 : index
    %c0_8 = arith.constant 0 : index
    %16 = vector.load %arg1[%c16, %c0_8] : memref<64x40xf32, #tpu.memory_space<vmem>>, vector<1x32xf32>
    %cst_9 = arith.constant dense<0.000000e+00> : vector<2x32xf32>
    %17 = tpu.matmul %14, %15, %cst_9 {dimension_numbers = #tpu.dot_dimension_numbers<[1], [0], [0], [1], [0, 0, 1, 1], [], []>} : vector<2x8xf32>, vector<8x32xf32>, vector<2x32xf32> -> vector<2x32xf32>
    %18 = vector.broadcast %16 : vector<1x32xf32> to vector<2x32xf32>
    %19 = arith.addf %17, %18 : vector<2x32xf32>
    %cst_10 = arith.constant 0.000000e+00 : f32
    %20 = vector.broadcast %cst_10 : f32 to vector<2x32xf32>
    %21 = arith.maximumf %19, %20 : vector<2x32xf32>
    %c24 = arith.constant 24 : index
    %c0_11 = arith.constant 0 : index
    %22 = vector.load %arg1[%c24, %c0_11] : memref<64x40xf32, #tpu.memory_space<vmem>>, vector<32x16xf32>
    %c56 = arith.constant 56 : index
    %c0_12 = arith.constant 0 : index
    %23 = vector.load %arg1[%c56, %c0_12] : memref<64x40xf32, #tpu.memory_space<vmem>>, vector<1x16xf32>
    %cst_13 = arith.constant dense<0.000000e+00> : vector<2x16xf32>
    %24 = tpu.matmul %21, %22, %cst_13 {dimension_numbers = #tpu.dot_dimension_numbers<[1], [0], [0], [1], [0, 0, 1, 1], [], []>} : vector<2x32xf32>, vector<32x16xf32>, vector<2x16xf32> -> vector<2x16xf32>
    %25 = vector.broadcast %23 : vector<1x16xf32> to vector<2x16xf32>
    %26 = arith.addf %24, %25 : vector<2x16xf32>
    %c0_14 = arith.constant 0 : index
    %c0_15 = arith.constant 0 : index
    %27 = vector.load %arg2[%c0_14, %c0_15] : memref<2x16xf32, #tpu.memory_space<vmem>>, vector<2x16xf32>
    tpu.vector_store %arg2[%c0_14, %c0_15], %26 {strides = array<i32>} : memref<2x16xf32, #tpu.memory_space<vmem>>, vector<2x16xf32>,
    return
  }
}

</mosaic_0001>

<llo_original>
// kernel: branch_forward.1
$region0: #{branch_forward.1}
  #allocation0 [shape = 'u32[]', space=smem, size = 0x4, offset = 0x4, fixed_abs, tag = 'smem constant byte address 0x4 - core index']
  #allocation1 [shape = 'u32[144,128]{1,0:T(1,128)}', space=vmem, size = 0x12000, scoped, tag = 'internal scratch']
  %s0 = inlined_call_operand.vmem [shape: f32[40,512], index: 0, kind: input, shape index: {}]
  %s1 = inlined_call_operand.vmem [shape: f32[64,40], index: 1, kind: input, shape index: {}]
  %s2 = inlined_call_operand.hbm [shape: f32[2,16], index: 2, kind: output, shape index: {}]
  %s3 = sld [smem:[#allocation0]]
  $region18: #{branch_forward.1} parent=0
    _
  %s5 = ssub.s32 1, %s3
  %s6 = scalar_select 0, %s5, %s3
  $region1: #{branch_forward.1} parent=0
    #allocation2 [shape = 'u8[1024]{0}', space=vmem, size = 0x400, scoped, tag = 'output window, operand 0, single buffered']
    #allocation3 [shape = 's32[1]{0}', space=sflag, size = 0x4, scoped, tag = 'scoped memory for branch_forward.1']
    %7 = vsyncpa [#allocation3], 0
    // Predicated region
    $region2: #{branch_forward.1} parent=1 // pred_check
      _
    $region3: #{branch_forward.1} parent=1 // pred_check_branch
      %9 = sbr.rel (0) target = $region5
    $region4: #{branch_forward.1} parent=1 // pred_region
      _
    $region5: #{branch_forward.1} parent=1 // pred_fallthru
      _
    // Predicated region
    $region6: #{branch_forward.1} parent=1 // pred_check
      _
    $region7: #{branch_forward.1} parent=1 // pred_check_branch
      %11 = sbr.rel (0) target = $region9
    $region8: #{branch_forward.1} parent=1 // pred_region
      _
    $region9: #{branch_forward.1} parent=1 // pred_fallthru
      _
    %v12 = vld [vmem:[%s1] sm:$0xff]
    %v13 = vld [vmem:[%s0] sm:$0xff]
    %v14 = vld [vmem:[%s0 + $0x8] sm:$0xff]
    %v15 = vld [vmem:[%s0 + $0x10] sm:$0xff]
    %v16 = vld [vmem:[%s0 + $0x18] sm:$0xff]
    %v17 = vld [vmem:[%s0 + $0x20] sm:$0xff]
    %v18 = vld [vmem:[%s0 + $0x28] sm:$0xff]
    %v19 = vld [vmem:[%s0 + $0x30] sm:$0xff]
    %v20 = vld [vmem:[%s0 + $0x38] sm:$0xff]
    %v21 = vld [vmem:[%s0 + $0x40] sm:$0xff]
    %v22 = vld [vmem:[%s0 + $0x48] sm:$0xff]
    %v23 = vld [vmem:[%s0 + $0x50] sm:$0xff]
    %v24 = vld [vmem:[%s0 + $0x58] sm:$0xff]
    %v25 = vld [vmem:[%s0 + $0x60] sm:$0xff]
    %v26 = vld [vmem:[%s0 + $0x68] sm:$0xff]
    %v27 = vld [vmem:[%s0 + $0x70] sm:$0xff]
    %v28 = vld [vmem:[%s0 + $0x78] sm:$0xff]
    %v29 = vld [vmem:[%s0 + $0x80] sm:$0xff]
    %v30 = vld [vmem:[%s0 + $0x88] sm:$0xff]
    %v31 = vld [vmem:[%s0 + $0x90] sm:$0xff]
    %v32 = vld [vmem:[%s0 + $0x98] sm:$0xff]
    %vm33 = vcmask 326656
    %v35 = vsel %vm33, %v12, 0
    %37 = vmatprep.subr.mxu0 %v14
    %38 = vmatpush1.msra.mxu0 %v13
    %39 = vmatprep.subr.mxu0 %v18
    %40 = vmatpush1.msra.mxu0 %v17
    %41 = vmatprep.subr.mxu0 %v22
    %42 = vmatpush1.msra.mxu0 %v21
    %43 = vmatprep.subr.mxu0 %v26
    %44 = vmatpush1.msra.mxu0 %v25
    %45 = vmatprep.subr.mxu0 %v30
    %46 = vmatpush1.msra.mxu0 %v29
    %47 = vmatprep.subr.mxu0 0.0
    %48 = vmatpush1.msra.mxu0 0.0
    %49 = vmatprep.subr.mxu0 0.0
    %50 = vmatpush1.msra.mxu0 0.0
    %51 = vmatprep.subr.mxu0 0.0
    %52 = vmatpush1.msra.mxu0 0.0
    %53 = vmatprep.subr.mxu0 0.0
    %54 = vmatpush1.msra.mxu0 0.0
    %55 = vmatprep.subr.mxu0 0.0
    %56 = vmatpush1.msra.mxu0 0.0
    %57 = vmatprep.subr.mxu0 0.0
    %58 = vmatpush1.msra.mxu0 0.0
    %59 = vmatprep.subr.mxu0 0.0
    %60 = vmatpush1.msra.mxu0 0.0
    %61 = vmatprep.subr.mxu0 0.0
    %62 = vmatpush1.msra.mxu0 0.0
    %63 = vmatprep.subr.mxu0 0.0
    %64 = vmatpush1.msra.mxu0 0.0
    %65 = vmatprep.subr.mxu0 0.0
    %66 = vmatpush1.msra.mxu0 0.0
    %67 = vmatprep.subr.mxu0 0.0
    %68 = vmatpush1.msra.mxu0 0.0
    %69 = vmatprep.subr.mxu0 0.0
    %70 = vmatpush1.msra.mxu0 0.0
    %71 = vmatprep.subr.mxu0 0.0
    %72 = vmatpush1.msra.mxu0 0.0
    %73 = vmatprep.subr.mxu0 0.0
    %74 = vmatpush1.msra.mxu0 0.0
    %75 = vmatprep.subr.mxu0 0.0
    %76 = vmatpush1.msra.mxu0 0.0
    %77 = vmatprep.subr.mxu0 0.0
    %78 = vmatpush1.msra.mxu0 0.0
    %79 = vmatprep.subr.mxu0 0.0
    %80 = vmatpush1.msra.mxu0 0.0
    %81 = vmatprep.subr.mxu0 0.0
    %82 = vmatpush1.msra.mxu0 0.0
    %83 = vmatprep.subr.mxu0 0.0
    %84 = vmatpush1.msra.mxu0 0.0
    %85 = vmatprep.subr.mxu0 0.0
    %86 = vmatpush1.msra.mxu0 0.0
    %87 = vmatprep.subr.mxu0 0.0
    %88 = vmatpush1.msra.mxu0 0.0
    %89 = vmatprep.subr.mxu0 0.0
    %90 = vmatpush1.msra.mxu0 0.0
    %91 = vmatprep.subr.mxu0 0.0
    %92 = vmatpush1.msra.mxu0 0.0
    %93 = vmatprep.subr.mxu0 0.0
    %94 = vmatpush1.msra.mxu0 0.0
    %95 = vmatprep.subr.mxu0 0.0
    %96 = vmatpush1.msra.mxu0 0.0
    %97 = vmatprep.subr.mxu0 0.0
    %98 = vmatpush1.msra.mxu0 0.0
    %99 = vmatprep.subr.mxu0 0.0
    %100 = vmatpush1.msra.mxu0 0.0
    %101 = vmatprep.mubr.f32.mxu0 0.0
    %102 = vmatmul.mubr.f32.gmra.mrb[0].mxu0 %v35
    %v103 = vpop.f32.mrb[0].mxu0
    %v104 = vadd.f32 0.0, %v103
    %v105 = vpop.f32.mrb[0].mxu0
    %v106 = vadd.f32 0.0, %v105
    %107 = vdwg.mxu0
    %108 = vmatprep.subr.mxu0 %v16
    %109 = vmatpush1.msra.mxu0 %v15
    %110 = vmatprep.subr.mxu0 %v20
    %111 = vmatpush1.msra.mxu0 %v19
    %112 = vmatprep.subr.mxu0 %v24
    %113 = vmatpush1.msra.mxu0 %v23
    %114 = vmatprep.subr.mxu0 %v28
    %115 = vmatpush1.msra.mxu0 %v27
    %116 = vmatprep.subr.mxu0 %v32
    %117 = vmatpush1.msra.mxu0 %v31
    %118 = vmatprep.subr.mxu0 0.0
    %119 = vmatpush1.msra.mxu0 0.0
    %120 = vmatprep.subr.mxu0 0.0
    %121 = vmatpush1.msra.mxu0 0.0
    %122 = vmatprep.subr.mxu0 0.0
    %123 = vmatpush1.msra.mxu0 0.0
    %124 = vmatprep.subr.mxu0 0.0
    %125 = vmatpush1.msra.mxu0 0.0
    %126 = vmatprep.subr.mxu0 0.0
    %127 = vmatpush1.msra.mxu0 0.0
    %128 = vmatprep.subr.mxu0 0.0
    %129 = vmatpush1.msra.mxu0 0.0
    %130 = vmatprep.subr.mxu0 0.0
    %131 = vmatpush1.msra.mxu0 0.0
    %132 = vmatprep.subr.mxu0 0.0
    %133 = vmatpush1.msra.mxu0 0.0
    %134 = vmatprep.subr.mxu0 0.0
    %135 = vmatpush1.msra.mxu0 0.0
    %136 = vmatprep.subr.mxu0 0.0
    %137 = vmatpush1.msra.mxu0 0.0
    %138 = vmatprep.subr.mxu0 0.0
    %139 = vmatpush1.msra.mxu0 0.0
    %140 = vmatprep.subr.mxu0 0.0
    %141 = vmatpush1.msra.mxu0 0.0
    %142 = vmatprep.subr.mxu0 0.0
    %143 = vmatpush1.msra.mxu0 0.0
    %144 = vmatprep.subr.mxu0 0.0
    %145 = vmatpush1.msra.mxu0 0.0
    %146 = vmatprep.subr.mxu0 0.0
    %147 = vmatpush1.msra.mxu0 0.0
    %148 = vmatprep.subr.mxu0 0.0
    %149 = vmatpush1.msra.mxu0 0.0
    %150 = vmatprep.subr.mxu0 0.0
    %151 = vmatpush1.msra.mxu0 0.0
    %152 = vmatprep.subr.mxu0 0.0
    %153 = vmatpush1.msra.mxu0 0.0
    %154 = vmatprep.subr.mxu0 0.0
    %155 = vmatpush1.msra.mxu0 0.0
    %156 = vmatprep.subr.mxu0 0.0
    %157 = vmatpush1.msra.mxu0 0.0
    %158 = vmatprep.subr.mxu0 0.0
    %159 = vmatpush1.msra.mxu0 0.0
    %160 = vmatprep.subr.mxu0 0.0
    %161 = vmatpush1.msra.mxu0 0.0
    %162 = vmatprep.subr.mxu0 0.0
    %163 = vmatpush1.msra.mxu0 0.0
    %164 = vmatprep.subr.mxu0 0.0
    %165 = vmatpush1.msra.mxu0 0.0
    %166 = vmatprep.subr.mxu0 0.0
    %167 = vmatpush1.msra.mxu0 0.0
    %168 = vmatprep.subr.mxu0 0.0
    %169 = vmatpush1.msra.mxu0 0.0
    %170 = vmatprep.subr.mxu0 0.0
    %171 = vmatpush1.msra.mxu0 0.0
    %172 = vmatprep.mubr.f32.mxu0 0.0
    %173 = vmatmul.mubr.f32.gmra.mrb[0].mxu0 %v35
    %v174 = vpop.f32.mrb[0].mxu0
    %v175 = vadd.f32 0.0, %v174
    %v176 = vpop.f32.mrb[0].mxu0
    %v177 = vadd.f32 0.0, %v176
    %178 = vdwg.mxu0
    %v179 = vmax.f32 %v104, 0.0
    %v180 = vmax.f32 %v106, 0.0
    %v181 = vmax.f32 %v175, 0.0
    %v182 = vmax.f32 %v177, 0.0
    %v183 = vadd.f32 %v179, %v180
    %184 = vadd.xlane.f32.xlu0 %v183
    %v185 = vpop.xlane.xlu0 %184
    %v186 = vadd.f32 %v181, %v182
    %187 = vadd.xlane.f32.xlu0 %v186
    %v188 = vpop.xlane.xlu0 %187
    %vm189 = vcmask 7168
    %v190 = vsel %vm189, %v185, %v188
    %191 = vxpose.xlu0.b32.start [1/16] %v190, 128
    %192 = vxpose.xlu0.b32.cont [2/16] 0.0, 128
    %193 = vxpose.xlu0.b32.cont [3/16] 0.0, 128
    %194 = vxpose.xlu0.b32.cont [4/16] 0.0, 128
    %195 = vxpose.xlu0.b32.cont [5/16] 0.0, 128
    %196 = vxpose.xlu0.b32.cont [6/16] 0.0, 128
    %197 = vxpose.xlu0.b32.cont [7/16] 0.0, 128
    %198 = vxpose.xlu0.b32.cont [8/16] 0.0, 128
    %199 = vxpose.xlu0.b32.cont [9/16] 0.0, 128
    %200 = vxpose.xlu0.b32.cont [10/16] 0.0, 128
    %201 = vxpose.xlu0.b32.cont [11/16] 0.0, 128
    %202 = vxpose.xlu0.b32.cont [12/16] 0.0, 128
    %203 = vxpose.xlu0.b32.cont [13/16] 0.0, 128
    %204 = vxpose.xlu0.b32.cont [14/16] 0.0, 128
    %205 = vxpose.xlu0.b32.cont [15/16] 0.0, 128
    %206 = vxpose.xlu0.b32.end [16/16] 0.0, 128
    %v207 = vpop.trf.xlu0
    %v208 = vpop.trf.xlu0
    %v209 = vpop.trf.xlu0
    %v210 = vpop.trf.xlu0
    %v211 = vpop.trf.xlu0
    %v212 = vpop.trf.xlu0
    %v213 = vpop.trf.xlu0
    %v214 = vpop.trf.xlu0
    %v215 = vpop.trf.xlu0
    %v216 = vpop.trf.xlu0
    %v217 = vpop.trf.xlu0
    %v218 = vpop.trf.xlu0
    %v219 = vpop.trf.xlu0
    %v220 = vpop.trf.xlu0
    %v221 = vpop.trf.xlu0
    %v222 = vpop.trf.xlu0
    %v223 = vmul.f32 %v207, 0.00390625
    %v224 = vld [vmem:[%s1 + $0x8] sm:$0xff]
    %v225 = vld [vmem:[%s1 + $0x10] sm:$0x1]
    %v226 = vlaneseq
    %v227 = vshrl.u32 %v226, 7
    %v228 = vsub.s32 0, %v227
    %v229 = vrot.slane %v225, %v228
    %vm230 = vcmask 64512
    %v232 = vsel %vm230, %v223, 0
    %234 = vmatprep.subr.mxu0 0.0
    %235 = vmatpush1.msra.mxu0 %v224
    %236 = vmatprep.subr.mxu0 0.0
    %237 = vmatpush1.msra.mxu0 0.0
    %238 = vmatprep.subr.mxu0 0.0
    %239 = vmatpush1.msra.mxu0 0.0
    %240 = vmatprep.subr.mxu0 0.0
    %241 = vmatpush1.msra.mxu0 0.0
    %242 = vmatprep.subr.mxu0 0.0
    %243 = vmatpush1.msra.mxu0 0.0
    %244 = vmatprep.subr.mxu0 0.0
    %245 = vmatpush1.msra.mxu0 0.0
    %246 = vmatprep.subr.mxu0 0.0
    %247 = vmatpush1.msra.mxu0 0.0
    %248 = vmatprep.subr.mxu0 0.0
    %249 = vmatpush1.msra.mxu0 0.0
    %250 = vmatprep.subr.mxu0 0.0
    %251 = vmatpush1.msra.mxu0 0.0
    %252 = vmatprep.subr.mxu0 0.0
    %253 = vmatpush1.msra.mxu0 0.0
    %254 = vmatprep.subr.mxu0 0.0
    %255 = vmatpush1.msra.mxu0 0.0
    %256 = vmatprep.subr.mxu0 0.0
    %257 = vmatpush1.msra.mxu0 0.0
    %258 = vmatprep.subr.mxu0 0.0
    %259 = vmatpush1.msra.mxu0 0.0
    %260 = vmatprep.subr.mxu0 0.0
    %261 = vmatpush1.msra.mxu0 0.0
    %262 = vmatprep.subr.mxu0 0.0
    %263 = vmatpush1.msra.mxu0 0.0
    %264 = vmatprep.subr.mxu0 0.0
    %265 = vmatpush1.msra.mxu0 0.0
    %266 = vmatprep.subr.mxu0 0.0
    %267 = vmatpush1.msra.mxu0 0.0
    %268 = vmatprep.subr.mxu0 0.0
    %269 = vmatpush1.msra.mxu0 0.0
    %270 = vmatprep.subr.mxu0 0.0
    %271 = vmatpush1.msra.mxu0 0.0
    %272 = vmatprep.subr.mxu0 0.0
    %273 = vmatpush1.msra.mxu0 0.0
    %274 = vmatprep.subr.mxu0 0.0
    %275 = vmatpush1.msra.mxu0 0.0
    %276 = vmatprep.subr.mxu0 0.0
    %277 = vmatpush1.msra.mxu0 0.0
    %278 = vmatprep.subr.mxu0 0.0
    %279 = vmatpush1.msra.mxu0 0.0
    %280 = vmatprep.subr.mxu0 0.0
    %281 = vmatpush1.msra.mxu0 0.0
    %282 = vmatprep.subr.mxu0 0.0
    %283 = vmatpush1.msra.mxu0 0.0
    %284 = vmatprep.subr.mxu0 0.0
    %285 = vmatpush1.msra.mxu0 0.0
    %286 = vmatprep.subr.mxu0 0.0
    %287 = vmatpush1.msra.mxu0 0.0
    %288 = vmatprep.subr.mxu0 0.0
    %289 = vmatpush1.msra.mxu0 0.0
    %290 = vmatprep.subr.mxu0 0.0
    %291 = vmatpush1.msra.mxu0 0.0
    %292 = vmatprep.subr.mxu0 0.0
    %293 = vmatpush1.msra.mxu0 0.0
    %294 = vmatprep.subr.mxu0 0.0
    %295 = vmatpush1.msra.mxu0 0.0
    %296 = vmatprep.subr.mxu0 0.0
    %297 = vmatpush1.msra.mxu0 0.0
    %298 = vmatprep.mubr.f32.mxu0 0.0
    %299 = vmatmul.mubr.f32.gmra.mrb[0].mxu0 %v232
    %v300 = vpop.f32.mrb[0].mxu0
    %v301 = vadd.f32 %v229, %v300
    %v302 = vpop.f32.mrb[0].mxu0
    %303 = vdwg.mxu0
    %v304 = vmax.f32 %v301, 0.0
    %v305 = vld [vmem:[%s1 + $0x18] sm:$0xff]
    %v306 = vld [vmem:[%s1 + $0x20] sm:$0xff]
    %v307 = vld [vmem:[%s1 + $0x28] sm:$0xff]
    %v308 = vld [vmem:[%s1 + $0x30] sm:$0xff]
    %v309 = vld [vmem:[%s1 + $0x38] sm:$0x1]
    %v310 = vlaneseq
    %v311 = vshrl.u32 %v310, 7
    %v312 = vsub.s32 0, %v311
    %v313 = vrot.slane %v309, %v312
    %vm314 = vcmask 261120
    %v316 = vsel %vm314, %v304, 0
    %318 = vmatprep.subr.mxu0 0.0
    %319 = vmatpush1.msra.mxu0 %v305
    %320 = vmatprep.subr.mxu0 0.0
    %321 = vmatpush1.msra.mxu0 %v306
    %322 = vmatprep.subr.mxu0 0.0
    %323 = vmatpush1.msra.mxu0 %v307
    %324 = vmatprep.subr.mxu0 0.0
    %325 = vmatpush1.msra.mxu0 %v308
    %326 = vmatprep.subr.mxu0 0.0
    %327 = vmatpush1.msra.mxu0 0.0
    %328 = vmatprep.subr.mxu0 0.0
    %329 = vmatpush1.msra.mxu0 0.0
    %330 = vmatprep.subr.mxu0 0.0
    %331 = vmatpush1.msra.mxu0 0.0
    %332 = vmatprep.subr.mxu0 0.0
    %333 = vmatpush1.msra.mxu0 0.0
    %334 = vmatprep.subr.mxu0 0.0
    %335 = vmatpush1.msra.mxu0 0.0
    %336 = vmatprep.subr.mxu0 0.0
    %337 = vmatpush1.msra.mxu0 0.0
    %338 = vmatprep.subr.mxu0 0.0
    %339 = vmatpush1.msra.mxu0 0.0
    %340 = vmatprep.subr.mxu0 0.0
    %341 = vmatpush1.msra.mxu0 0.0
    %342 = vmatprep.subr.mxu0 0.0
    %343 = vmatpush1.msra.mxu0 0.0
    %344 = vmatprep.subr.mxu0 0.0
    %345 = vmatpush1.msra.mxu0 0.0
    %346 = vmatprep.subr.mxu0 0.0
    %347 = vmatpush1.msra.mxu0 0.0
    %348 = vmatprep.subr.mxu0 0.0
    %349 = vmatpush1.msra.mxu0 0.0
    %350 = vmatprep.subr.mxu0 0.0
    %351 = vmatpush1.msra.mxu0 0.0
    %352 = vmatprep.subr.mxu0 0.0
    %353 = vmatpush1.msra.mxu0 0.0
    %354 = vmatprep.subr.mxu0 0.0
    %355 = vmatpush1.msra.mxu0 0.0
    %356 = vmatprep.subr.mxu0 0.0
    %357 = vmatpush1.msra.mxu0 0.0
    %358 = vmatprep.subr.mxu0 0.0
    %359 = vmatpush1.msra.mxu0 0.0
    %360 = vmatprep.subr.mxu0 0.0
    %361 = vmatpush1.msra.mxu0 0.0
    %362 = vmatprep.subr.mxu0 0.0
    %363 = vmatpush1.msra.mxu0 0.0
    %364 = vmatprep.subr.mxu0 0.0
    %365 = vmatpush1.msra.mxu0 0.0
    %366 = vmatprep.subr.mxu0 0.0
    %367 = vmatpush1.msra.mxu0 0.0
    %368 = vmatprep.subr.mxu0 0.0
    %369 = vmatpush1.msra.mxu0 0.0
    %370 = vmatprep.subr.mxu0 0.0
    %371 = vmatpush1.msra.mxu0 0.0
    %372 = vmatprep.subr.mxu0 0.0
    %373 = vmatpush1.msra.mxu0 0.0
    %374 = vmatprep.subr.mxu0 0.0
    %375 = vmatpush1.msra.mxu0 0.0
    %376 = vmatprep.subr.mxu0 0.0
    %377 = vmatpush1.msra.mxu0 0.0
    %378 = vmatprep.subr.mxu0 0.0
    %379 = vmatpush1.msra.mxu0 0.0
    %380 = vmatprep.subr.mxu0 0.0
    %381 = vmatpush1.msra.mxu0 0.0
    %382 = vmatprep.mubr.f32.mxu0 0.0
    %383 = vmatmul.mubr.f32.gmra.mrb[0].mxu0 %v316
    %v384 = vpop.f32.mrb[0].mxu0
    %v385 = vadd.f32 %v313, %v384
    %v386 = vpop.f32.mrb[0].mxu0
    %387 = vdwg.mxu0
    %vm388 = vcmask 123904
    %389 = vst.msk [vmem:[#allocation2] sm:$0x3] %vm388, %v385
    // Predicated region
    $region10: #{branch_forward.1} parent=1 // pred_check
      _
    $region11: #{branch_forward.1} parent=1 // pred_check_branch
      %391 = sbr.rel (0) target = $region13
    $region12: #{branch_forward.1} parent=1 // pred_region
      %s393 = ssub.s32 32, 32
      %394 = vsyncadd [#allocation3], %s393
      %s396 = sshll.u32 [#allocation2], 4
      %s397 = int_to_ptr.vmem [resolvable:$true] %s396
      %399 = dma.vmem_to_hbm [thread:$0]  %s397, 32, %s2, [#allocation3]
    $region13: #{branch_forward.1} parent=1 // pred_fallthru
      _
    // Predicated region
    $region14: #{branch_forward.1} parent=1 // pred_check
      _
    $region15: #{branch_forward.1} parent=1 // pred_check_branch
      %401 = sbr.rel (0) target = $region17
    $region16: #{branch_forward.1} parent=1 // pred_region
      %402 = dma.done [#allocation3], 32
    $region17: #{branch_forward.1} parent=1 // pred_fallthru
      _
    %403 = vsyncpa [#allocation3], 1

</llo_original>
